<compile_context>
chip_gen: v6e
topology: v6e:2x2x1
jax: 0.10.0
libtpu: 0.0.40
codegen_flags: <defaults>
</compile_context>

<pallas_src>
import functools

import jax
import jax.numpy as jnp
from jax.experimental import pallas as pl
from jax.experimental.pallas import tpu as pltpu

NORMALIZATION = ((0.485, 0.456, 0.406), (0.229, 0.224, 0.225))


# ---------------------------------------------------------------------------
# Fused (preprocess-folded) backbone stand-in + projector kernel.
#   patches_ref : (block_b, Np, Pd) bf16   raw pixel patches (values 0..255)
#   wp_ref      : (Pd, G) f32              patch-embed weight, norm folded in
#   bp_ref      : (1, G)  f32              patch-embed bias,   norm folded in
#   wq_ref      : (G, E)  f32              projector weight
#   bq_ref      : (1, E)  f32              projector bias
#   out_ref     : (1, block_b, E) f32      projector(feat)
#   feat_ref    : (1, block_b, G) f32      backbone feature
# ---------------------------------------------------------------------------
def _encoder_kernel(patches_ref, wp_ref, bp_ref, wq_ref, bq_ref,
                    out_ref, feat_ref):
    x = patches_ref[...].astype(jnp.float32)            # cast bf16->f32 in-kernel
    pooled = jnp.mean(x, axis=1)                         # (bb, Pd) token mean first
    feat = jnp.dot(pooled, wp_ref[...],
                   preferred_element_type=jnp.float32) + bp_ref[...]   # (bb, G)
    out = jnp.dot(feat, wq_ref[...],
                  preferred_element_type=jnp.float32) + bq_ref[...]    # (bb, E)
    feat_ref[0] = feat
    out_ref[0] = out


def _pick_block_b(batch):
    """Largest divisor of `batch` <= 8 that still leaves a grid of >= 2 steps."""
    target = max(1, min(8, batch // 2))
    for cand in range(target, 0, -1):
        if batch % cand == 0:
            return cand
    return 1


def _encode(patches, wp, bp, wq, bq):
    B, Np, Pd = patches.shape
    G = wp.shape[1]
    E = wq.shape[1]
    block_b = _pick_block_b(B)
    nb = B // block_b

    out3, feat3 = pl.pallas_call(
        _encoder_kernel,
        out_shape=(
            jax.ShapeDtypeStruct((nb, block_b, E), jnp.float32),
            jax.ShapeDtypeStruct((nb, block_b, G), jnp.float32),
        ),
        grid=(nb,),
        in_specs=[
            pl.BlockSpec((block_b, Np, Pd), lambda b: (b, 0, 0)),
            pl.BlockSpec((Pd, G), lambda b: (0, 0)),
            pl.BlockSpec((1, G), lambda b: (0, 0)),
            pl.BlockSpec((G, E), lambda b: (0, 0)),
            pl.BlockSpec((1, E), lambda b: (0, 0)),
        ],
        out_specs=(
            pl.BlockSpec((1, block_b, E), lambda b: (b, 0, 0)),
            pl.BlockSpec((1, block_b, G), lambda b: (b, 0, 0)),
        ),
        compiler_params=pltpu.CompilerParams(
            dimension_semantics=("parallel",)),
    )(patches, wp, bp, wq, bq)

    return out3.reshape(B, E), feat3.reshape(B, G)


# ---------------------------------------------------------------------------
# Glue (pure data movement / tiny weight algebra, fused under jax.jit)
# ---------------------------------------------------------------------------
def patchify(x, patch):
    B, C, H, W = x.shape
    x = x.reshape(B, C, H // patch, patch, W // patch, patch)
    x = x.transpose(0, 2, 4, 1, 3, 5)
    return x.reshape(B, (H // patch) * (W // patch), C * patch * patch)


def _fold_normalization(wp, bp, patch):
    """Fold ConvertImageDtype(1/255) + Normalize(mean, std) into (Wp, bp)."""
    mean = jnp.asarray(NORMALIZATION[0], jnp.float32)
    std = jnp.asarray(NORMALIZATION[1], jnp.float32)
    pp = patch * patch
    scale_k = jnp.repeat(1.0 / (255.0 * std), pp)     # (Pd,)  per patch-dim scale
    shift_k = jnp.repeat(-mean / std, pp)             # (Pd,)  per patch-dim shift
    wp_folded = wp * scale_k[:, None]                 # (Pd, G)
    bp_folded = bp + shift_k[None, :] @ wp            # (1, G)
    return wp_folded, bp_folded


@functools.partial(jax.jit, static_argnames=("patch",))
def encoder_forward(params, x_u8, patch=8):
    """Mirror of Encoder.forward: returns (projector(feat), feat)."""
    wp_f, bp_f = _fold_normalization(params["w_patch"], params["b_patch"], patch)
    # Single cheap uint8->bf16 pass (transpose + cast fuse under jit); bf16
    # represents 0..255 exactly. All arithmetic happens inside the Pallas kernel.
    patches = patchify(x_u8, patch).astype(jnp.bfloat16)
    return _encode(patches, wp_f, bp_f, params["w_proj"], params["b_proj"])


if __name__ == "__main__":
    # Small shapes consistent with the forward: image input (B, 3, H, W)
    B, C, H, W = 2, 3, 16, 16
    patch = 8
    Np = (H // patch) * (W // patch)        # 4 tokens
    Pd = C * patch * patch                  # 192 patch dim
    gap_dim = 32                            # backbone feature dim
    emb_dim = 16                            # projector output dim

    key = jax.random.PRNGKey(0)
    k_x, k_wp, k_bp, k_wq, k_bq = jax.random.split(key, 5)

    # uint8 image, as the PyTorch preprocess (ConvertImageDtype) expects
    x = jax.random.randint(k_x, (B, C, H, W), 0, 256, dtype=jnp.int32).astype(jnp.uint8)

    params = {
        "w_patch": 0.02 * jax.random.normal(k_wp, (Pd, gap_dim), jnp.float32),
        "b_patch": 0.01 * jax.random.normal(k_bp, (1, gap_dim), jnp.float32),
        "w_proj": 0.02 * jax.random.normal(k_wq, (gap_dim, emb_dim), jnp.float32),
        "b_proj": 0.01 * jax.random.normal(k_bq, (1, emb_dim), jnp.float32),
    }

    proj, feat = encoder_forward(params, x, patch=patch)
    jax.block_until_ready((proj, feat))

    # Pure-JAX reference of the *unfused* pipeline (normalize -> patch embed ->
    # token mean -> projector) to validate the algebraic folding.
    mean = jnp.asarray(NORMALIZATION[0], jnp.float32).reshape(1, C, 1, 1)
    std = jnp.asarray(NORMALIZATION[1], jnp.float32).reshape(1, C, 1, 1)
    x_norm = (x.astype(jnp.float32) / 255.0 - mean) / std
    p_ref = patchify(x_norm, patch)
    tokens = jnp.matmul(p_ref, params["w_patch"]) + params["b_patch"]
    feat_ref = tokens.mean(axis=1)
    proj_ref = jnp.matmul(feat_ref, params["w_proj"]) + params["b_proj"]

    assert proj.shape == (B, emb_dim) and feat.shape == (B, gap_dim)
    assert proj.dtype == jnp.float32 and feat.dtype == jnp.float32
    assert jnp.allclose(feat, feat_ref, atol=5e-2, rtol=5e-2)
    assert jnp.allclose(proj, proj_ref, atol=5e-2, rtol=5e-2)
    print("KERNEL_OK")
</pallas_src>

<mosaic_0001>
module attributes {stable_mosaic.version = 11 : i64} {
  func.func @_encoder_kernel(%arg0: i32, %arg1: memref<1x4x192xbf16, #tpu.memory_space<vmem>>, %arg2: memref<192x32xf32, #tpu.memory_space<vmem>>, %arg3: memref<1x32xf32, #tpu.memory_space<vmem>>, %arg4: memref<32x16xf32, #tpu.memory_space<vmem>>, %arg5: memref<1x16xf32, #tpu.memory_space<vmem>>, %arg6: memref<1x1x16xf32, #tpu.memory_space<vmem>>, %arg7: memref<1x1x32xf32, #tpu.memory_space<vmem>>) attributes {dimension_semantics = [#tpu.dimension_semantics<parallel>], iteration_bounds = array<i64: 2>, scalar_prefetch = 0 : i64, scratch_operands = 0 : i64, tpu.core_type = #tpu.core_type<tc>, window_params = [{transform_indices = @transform_0, window_bounds = array<i64: 1, 4, 192>}, {pipeline_mode = #tpu.pipeline_mode<synchronous>, transform_indices = @transform_1, window_bounds = array<i64: 192, 32>}, {pipeline_mode = #tpu.pipeline_mode<synchronous>, transform_indices = @transform_2, window_bounds = array<i64: 1, 32>}, {pipeline_mode = #tpu.pipeline_mode<synchronous>, transform_indices = @transform_3, window_bounds = array<i64: 32, 16>}, {pipeline_mode = #tpu.pipeline_mode<synchronous>, transform_indices = @transform_4, window_bounds = array<i64: 1, 16>}, {transform_indices = @transform_5, window_bounds = array<i64: 1, 1, 16>}, {transform_indices = @transform_6, window_bounds = array<i64: 1, 1, 32>}]} {
    %c0 = arith.constant 0 : index
    %c0_0 = arith.constant 0 : index
    %c0_1 = arith.constant 0 : index
    %0 = vector.load %arg1[%c0, %c0_0, %c0_1] : memref<1x4x192xbf16, #tpu.memory_space<vmem>>, vector<1x4x192xbf16>
    %1 = arith.extf %0 : vector<1x4x192xbf16> to vector<1x4x192xf32>
    %cst = arith.constant dense<0.000000e+00> : vector<1x192xf32>
    %2 = vector.multi_reduction <add>, %1, %cst [1] : vector<1x4x192xf32> to vector<1x192xf32>
    %cst_2 = arith.constant 4.000000e+00 : f32
    %3 = vector.broadcast %cst_2 : f32 to vector<1x192xf32>
    %4 = arith.divf %2, %3 : vector<1x192xf32>
    %c0_3 = arith.constant 0 : index
    %c0_4 = arith.constant 0 : index
    %5 = vector.load %arg2[%c0_3, %c0_4] : memref<192x32xf32, #tpu.memory_space<vmem>>, vector<192x32xf32>
    %cst_5 = arith.constant dense<0.000000e+00> : vector<1x32xf32>
    %6 = tpu.matmul %4, %5, %cst_5 {dimension_numbers = #tpu.dot_dimension_numbers<[1], [0], [0], [1], [0, 0, 1, 1], [], []>} : vector<1x192xf32>, vector<192x32xf32>, vector<1x32xf32> -> vector<1x32xf32>
    %c0_6 = arith.constant 0 : index
    %c0_7 = arith.constant 0 : index
    %7 = vector.load %arg3[%c0_6, %c0_7] : memref<1x32xf32, #tpu.memory_space<vmem>>, vector<1x32xf32>
    %8 = arith.addf %6, %7 : vector<1x32xf32>
    %c0_8 = arith.constant 0 : index
    %c0_9 = arith.constant 0 : index
    %9 = vector.load %arg4[%c0_8, %c0_9] : memref<32x16xf32, #tpu.memory_space<vmem>>, vector<32x16xf32>
    %cst_10 = arith.constant dense<0.000000e+00> : vector<1x16xf32>
    %10 = tpu.matmul %8, %9, %cst_10 {dimension_numbers = #tpu.dot_dimension_numbers<[1], [0], [0], [1], [0, 0, 1, 1], [], []>} : vector<1x32xf32>, vector<32x16xf32>, vector<1x16xf32> -> vector<1x16xf32>
    %c0_11 = arith.constant 0 : index
    %c0_12 = arith.constant 0 : index
    %11 = vector.load %arg5[%c0_11, %c0_12] : memref<1x16xf32, #tpu.memory_space<vmem>>, vector<1x16xf32>
    %12 = arith.addf %10, %11 : vector<1x16xf32>
    %c0_13 = arith.constant 0 : index
    %c0_14 = arith.constant 0 : index
    %c0_15 = arith.constant 0 : index
    %13 = vector.load %arg7[%c0_13, %c0_14, %c0_15] : memref<1x1x32xf32, #tpu.memory_space<vmem>>, vector<1x1x32xf32>
    %14 = vector.shape_cast %13 : vector<1x1x32xf32> to vector<1x32xf32>
    %15 = vector.shape_cast %8 : vector<1x32xf32> to vector<1x1x32xf32>
    tpu.vector_store %arg7[%c0_13, %c0_14, %c0_15], %15 {strides = array<i32>} : memref<1x1x32xf32, #tpu.memory_space<vmem>>, vector<1x1x32xf32>,
    %c0_16 = arith.constant 0 : index
    %c0_17 = arith.constant 0 : index
    %c0_18 = arith.constant 0 : index
    %16 = vector.load %arg6[%c0_16, %c0_17, %c0_18] : memref<1x1x16xf32, #tpu.memory_space<vmem>>, vector<1x1x16xf32>
    %17 = vector.shape_cast %16 : vector<1x1x16xf32> to vector<1x16xf32>
    %18 = vector.shape_cast %12 : vector<1x16xf32> to vector<1x1x16xf32>
    tpu.vector_store %arg6[%c0_16, %c0_17, %c0_18], %18 {strides = array<i32>} : memref<1x1x16xf32, #tpu.memory_space<vmem>>, vector<1x1x16xf32>,
    return
  }
  func.func @transform_0(%arg0: i32) -> (i32, i32, i32) {
    %c0_i32 = arith.constant 0 : i32
    %c0_i32_0 = arith.constant 0 : i32
    %c0_i32_1 = arith.constant 0 : i32
    return %arg0, %c0_i32, %c0_i32_0 : i32, i32, i32
  }
  func.func @transform_1(%arg0: i32) -> (i32, i32) {
    %c0_i32 = arith.constant 0 : i32
    %c0_i32_0 = arith.constant 0 : i32
    %c0_i32_1 = arith.constant 0 : i32
    return %c0_i32, %c0_i32_0 : i32, i32
  }
  func.func @transform_2(%arg0: i32) -> (i32, i32) {
    %c0_i32 = arith.constant 0 : i32
    %c0_i32_0 = arith.constant 0 : i32
    %c0_i32_1 = arith.constant 0 : i32
    return %c0_i32, %c0_i32_0 : i32, i32
  }
  func.func @transform_3(%arg0: i32) -> (i32, i32) {
    %c0_i32 = arith.constant 0 : i32
    %c0_i32_0 = arith.constant 0 : i32
    %c0_i32_1 = arith.constant 0 : i32
    return %c0_i32, %c0_i32_0 : i32, i32
  }
  func.func @transform_4(%arg0: i32) -> (i32, i32) {
    %c0_i32 = arith.constant 0 : i32
    %c0_i32_0 = arith.constant 0 : i32
    %c0_i32_1 = arith.constant 0 : i32
    return %c0_i32, %c0_i32_0 : i32, i32
  }
  func.func @transform_5(%arg0: i32) -> (i32, i32, i32) {
    %c0_i32 = arith.constant 0 : i32
    %c0_i32_0 = arith.constant 0 : i32
    %c0_i32_1 = arith.constant 0 : i32
    return %arg0, %c0_i32, %c0_i32_0 : i32, i32, i32
  }
  func.func @transform_6(%arg0: i32) -> (i32, i32, i32) {
    %c0_i32 = arith.constant 0 : i32
    %c0_i32_0 = arith.constant 0 : i32
    %c0_i32_1 = arith.constant 0 : i32
    return %arg0, %c0_i32, %c0_i32_0 : i32, i32, i32
  }
}

</mosaic_0001>

<llo_original>
// kernel: encoder_forward.1
$region0: #{encoder_forward.1}
  #allocation0 [shape = 'u32[]', space=smem, size = 0x4, offset = 0x4, fixed_abs, tag = 'smem constant byte address 0x4 - core index']
  #allocation1 [shape = 'u32[144,128]{1,0:T(1,128)}', space=vmem, size = 0x12000, scoped, tag = 'internal scratch']
  %s0 = inlined_call_operand.vmem [shape: bf16[2,4,192], index: 0, kind: input, shape index: {}]
  %s1 = inlined_call_operand.vmem [shape: f32[192,32], index: 1, kind: input, shape index: {}]
  %s2 = inlined_call_operand.vmem [shape: f32[1,32], index: 2, kind: input, shape index: {}]
  %s3 = inlined_call_operand.vmem [shape: f32[32,16], index: 3, kind: input, shape index: {}]
  %s4 = inlined_call_operand.vmem [shape: f32[1,16], index: 4, kind: input, shape index: {}]
  %s5 = inlined_call_operand.hbm [shape: f32[2,1,16], index: 5, kind: output, shape index: {0}]
  %s6 = inlined_call_operand.hbm [shape: f32[2,1,32], index: 6, kind: output, shape index: {1}]
  %7 = xla_tuple %s5, %s6
  %s8 = sld [smem:[#allocation0]]
  $region61: #{encoder_forward.1} parent=0
    _
  %s10 = ssub.s32 1, %s8
  %s11 = scalar_select 0, %s10, %s8
  $region1: #{encoder_forward.1} parent=0
    #allocation2 [shape = 'u8[1024]{0}', space=vmem, size = 0x400, scoped, tag = 'output window, operand 0']
    #allocation3 [shape = 's32[2]{0}', space=sflag, size = 0x8, scoped, tag = 'scoped memory for encoder_forward.1']
    #allocation4 [shape = 'u8[1024]{0}', space=vmem, size = 0x400, scoped, tag = 'output window, operand 1']
    #allocation5 [shape = 's32[2]{0}', space=sflag, size = 0x8, scoped, tag = 'scoped memory for encoder_forward.1']
    %12 = vsyncpa [#allocation3], 0
    %s13 = scalar_lea.sflag [#allocation3], 1
    %14 = vsyncpa %s13, 0
    %15 = vsyncpa [#allocation5], 0
    %s16 = scalar_lea.sflag [#allocation5], 1
    %17 = vsyncpa %s16, 0
    loop: start=0, step=1, limit=4
    $region2: #{encoder_forward.1} parent=1 // loop_pre_header
      _
    $region3: #{encoder_forward.1} parent=1 // loop_header
      %s19 = sphi 0, %s23
      %p20 = scmp.ge.s32.totalorder %s19, 4
      %s29 = sphi 0, %s31
      %s32 = sphi 0, %s29
      %s33 = sphi 0, %s32
      %s49 = sphi 0, %s33
      %s53 = sphi 0, %s53
      %s55 = sphi 0, %s53
      %s56 = sphi 0, %s55
      %s70 = sphi 0, %s56
      %s74 = sphi 0, %s74
      %s76 = sphi 0, %s74
      %s77 = sphi 0, %s76
      %s91 = sphi 0, %s77
      %s95 = sphi 0, %s95
      %s97 = sphi 0, %s95
      %s98 = sphi 0, %s97
      %s112 = sphi 0, %s98
      %s116 = sphi 0, %s116
      %s118 = sphi 0, %s116
      %s119 = sphi 0, %s118
      %s133 = sphi 0, %s119
      %s139 = sphi 0, %s141
      %s142 = sphi 0, %s139
      %s143 = sphi 0, %s142
      %s159 = sphi 0, %s143
      %s165 = sphi 0, %s167
      %s168 = sphi 0, %s165
      %s169 = sphi 0, %s168
      %s185 = sphi 0, %s169
    $region4: #{encoder_forward.1} parent=1 // loop_header_branch
      %22 = sbr.rel (%p20) target = $region8
    $region5: #{encoder_forward.1} parent=1 // loop_body
      %s24 = ssub.s32 %s19, 1
      %s25 = ssub.s32 %s19, 2
      %s26 = sadd.s32 %s19, 1
      %s27 = ssub.s32 %s19, %s26
      %p28 = scmp.eq.s32.totalorder %s27, 0
      %s30 = sadd.s32 %s29, 1
      %s31 = scalar_select %p28, %s29, %s30
      %p34 = pneg %p28
      %p35 = scmp.eq.s32.totalorder %s19, 1
      %p36 = por %p34, %p35
      %p37 = scmp.ne.s32.totalorder %s29, %s32
      %p38 = scmp.eq.s32.totalorder %s19, 0
      %p39 = por %p37, %p38
      %p40 = scmp.ne.s32.totalorder %s29, %s32
      %p41 = scmp.eq.s32.totalorder %s24, 1
      %p42 = por %p40, %p41
      %p43 = scmp.ne.s32.totalorder %s32, %s33
      %p44 = scmp.eq.s32.totalorder %s24, 0
      %p45 = por %p43, %p44
      %p46 = scmp.ne.s32.totalorder %s32, %s33
      %p47 = scmp.eq.s32.totalorder %s25, 1
      %p48 = por %p46, %p47
      %p50 = scmp.ne.s32.totalorder %s33, %s49
      %p51 = scmp.eq.s32.totalorder %s25, 0
      %p52 = por %p50, %p51
      %s54 = sadd.s32 %s53, 1
      %p57 = scmp.eq.s32.totalorder %s19, 1
      %p58 = scmp.ne.s32.totalorder %s53, %s55
      %p59 = scmp.eq.s32.totalorder %s19, 0
      %p60 = por %p58, %p59
      %p61 = scmp.ne.s32.totalorder %s53, %s55
      %p62 = scmp.eq.s32.totalorder %s24, 1
      %p63 = por %p61, %p62
      %p64 = scmp.ne.s32.totalorder %s55, %s56
      %p65 = scmp.eq.s32.totalorder %s24, 0
      %p66 = por %p64, %p65
      %p67 = scmp.ne.s32.totalorder %s55, %s56
      %p68 = scmp.eq.s32.totalorder %s25, 1
      %p69 = por %p67, %p68
      %p71 = scmp.ne.s32.totalorder %s56, %s70
      %p72 = scmp.eq.s32.totalorder %s25, 0
      %p73 = por %p71, %p72
      %s75 = sadd.s32 %s74, 1
      %p78 = scmp.eq.s32.totalorder %s19, 1
      %p79 = scmp.ne.s32.totalorder %s74, %s76
      %p80 = scmp.eq.s32.totalorder %s19, 0
      %p81 = por %p79, %p80
      %p82 = scmp.ne.s32.totalorder %s74, %s76
      %p83 = scmp.eq.s32.totalorder %s24, 1
      %p84 = por %p82, %p83
      %p85 = scmp.ne.s32.totalorder %s76, %s77
      %p86 = scmp.eq.s32.totalorder %s24, 0
      %p87 = por %p85, %p86
      %p88 = scmp.ne.s32.totalorder %s76, %s77
      %p89 = scmp.eq.s32.totalorder %s25, 1
      %p90 = por %p88, %p89
      %p92 = scmp.ne.s32.totalorder %s77, %s91
      %p93 = scmp.eq.s32.totalorder %s25, 0
      %p94 = por %p92, %p93
      %s96 = sadd.s32 %s95, 1
      %p99 = scmp.eq.s32.totalorder %s19, 1
      %p100 = scmp.ne.s32.totalorder %s95, %s97
      %p101 = scmp.eq.s32.totalorder %s19, 0
      %p102 = por %p100, %p101
      %p103 = scmp.ne.s32.totalorder %s95, %s97
      %p104 = scmp.eq.s32.totalorder %s24, 1
      %p105 = por %p103, %p104
      %p106 = scmp.ne.s32.totalorder %s97, %s98
      %p107 = scmp.eq.s32.totalorder %s24, 0
      %p108 = por %p106, %p107
      %p109 = scmp.ne.s32.totalorder %s97, %s98
      %p110 = scmp.eq.s32.totalorder %s25, 1
      %p111 = por %p109, %p110
      %p113 = scmp.ne.s32.totalorder %s98, %s112
      %p114 = scmp.eq.s32.totalorder %s25, 0
      %p115 = por %p113, %p114
      %s117 = sadd.s32 %s116, 1
      %p120 = scmp.eq.s32.totalorder %s19, 1
      %p121 = scmp.ne.s32.totalorder %s116, %s118
      %p122 = scmp.eq.s32.totalorder %s19, 0
      %p123 = por %p121, %p122
      %p124 = scmp.ne.s32.totalorder %s116, %s118
      %p125 = scmp.eq.s32.totalorder %s24, 1
      %p126 = por %p124, %p125
      %p127 = scmp.ne.s32.totalorder %s118, %s119
      %p128 = scmp.eq.s32.totalorder %s24, 0
      %p129 = por %p127, %p128
      %p130 = scmp.ne.s32.totalorder %s118, %s119
      %p131 = scmp.eq.s32.totalorder %s25, 1
      %p132 = por %p130, %p131
      %p134 = scmp.ne.s32.totalorder %s119, %s133
      %p135 = scmp.eq.s32.totalorder %s25, 0
      %p136 = por %p134, %p135
      %s137 = ssub.s32 %s19, %s26
      %p138 = scmp.eq.s32.totalorder %s137, 0
      %s140 = sadd.s32 %s139, 1
      %s141 = scalar_select %p138, %s139, %s140
      %p144 = pneg %p138
      %p145 = scmp.eq.s32.totalorder %s19, 1
      %p146 = por %p144, %p145
      %p147 = scmp.ne.s32.totalorder %s139, %s142
      %p148 = scmp.eq.s32.totalorder %s19, 0
      %p149 = por %p147, %p148
      %p150 = scmp.ne.s32.totalorder %s139, %s142
      %p151 = scmp.eq.s32.totalorder %s24, 1
      %p152 = por %p150, %p151
      %p153 = scmp.ne.s32.totalorder %s142, %s143
      %p154 = scmp.eq.s32.totalorder %s24, 0
      %p155 = por %p153, %p154
      %p156 = scmp.ne.s32.totalorder %s142, %s143
      %p157 = scmp.eq.s32.totalorder %s25, 1
      %p158 = por %p156, %p157
      %p160 = scmp.ne.s32.totalorder %s143, %s159
      %p161 = scmp.eq.s32.totalorder %s25, 0
      %p162 = por %p160, %p161
      %s163 = ssub.s32 %s19, %s26
      %p164 = scmp.eq.s32.totalorder %s163, 0
      %s166 = sadd.s32 %s165, 1
      %s167 = scalar_select %p164, %s165, %s166
      %p170 = pneg %p164
      %p171 = scmp.eq.s32.totalorder %s19, 1
      %p172 = por %p170, %p171
      %p173 = scmp.ne.s32.totalorder %s165, %s168
      %p174 = scmp.eq.s32.totalorder %s19, 0
      %p175 = por %p173, %p174
      %p176 = scmp.ne.s32.totalorder %s165, %s168
      %p177 = scmp.eq.s32.totalorder %s24, 1
      %p178 = por %p176, %p177
      %p179 = scmp.ne.s32.totalorder %s168, %s169
      %p180 = scmp.eq.s32.totalorder %s24, 0
      %p181 = por %p179, %p180
      %p182 = scmp.ne.s32.totalorder %s168, %s169
      %p183 = scmp.eq.s32.totalorder %s25, 1
      %p184 = por %p182, %p183
      %p186 = scmp.ne.s32.totalorder %s169, %s185
      %p187 = scmp.eq.s32.totalorder %s25, 0
      %p188 = por %p186, %p187
      %p189 = scmp.le.s32.totalorder 1, %s19
      %p190 = scmp.lt.s32.totalorder %s19, 3
      %p191 = pnand %p189, %p190
      %p192 = pneg %p191
      // Predicated region
      $region9: #{encoder_forward.1} parent=5 // pred_check
        _
      $region10: #{encoder_forward.1} parent=5 // pred_check_branch
        %194 = sbr.rel (%p191) target = $region12
      $region11: #{encoder_forward.1} parent=5 // pred_region
        %s195 = ssub.s32 %s19, 1
        // Predicated region
        $region13: #{encoder_forward.1} parent=11 // pred_check
          %p196 = pneg %p66
        $region14: #{encoder_forward.1} parent=11 // pred_check_branch
          %198 = sbr.rel (%p196) target = $region16
        $region15: #{encoder_forward.1} parent=11 // pred_region
          _
        $region16: #{encoder_forward.1} parent=11 // pred_fallthru
          _
        // Predicated region
        $region17: #{encoder_forward.1} parent=11 // pred_check
          %p199 = pneg %p87
        $region18: #{encoder_forward.1} parent=11 // pred_check_branch
          %201 = sbr.rel (%p199) target = $region20
        $region19: #{encoder_forward.1} parent=11 // pred_region
          _
        $region20: #{encoder_forward.1} parent=11 // pred_fallthru
          _
        // Predicated region
        $region21: #{encoder_forward.1} parent=11 // pred_check
          %p202 = pneg %p108
        $region22: #{encoder_forward.1} parent=11 // pred_check_branch
          %204 = sbr.rel (%p202) target = $region24
        $region23: #{encoder_forward.1} parent=11 // pred_region
          _
        $region24: #{encoder_forward.1} parent=11 // pred_fallthru
          _
        // Predicated region
        $region25: #{encoder_forward.1} parent=11 // pred_check
          %p205 = pneg %p129
        $region26: #{encoder_forward.1} parent=11 // pred_check_branch
          %207 = sbr.rel (%p205) target = $region28
        $region27: #{encoder_forward.1} parent=11 // pred_region
          _
        $region28: #{encoder_forward.1} parent=11 // pred_fallthru
          _
      $region12: #{encoder_forward.1} parent=5 // pred_fallthru
        _
      %p208 = scmp.lt.s32.totalorder %s19, 2
      // Predicated region
      $region29: #{encoder_forward.1} parent=5 // pred_check
        %p209 = pneg %p208
      $region30: #{encoder_forward.1} parent=5 // pred_check_branch
        %211 = sbr.rel (%p209) target = $region32
      $region31: #{encoder_forward.1} parent=5 // pred_region
        // Predicated region
        $region33: #{encoder_forward.1} parent=31 // pred_check
          %p212 = pneg %p39
        $region34: #{encoder_forward.1} parent=31 // pred_check_branch
          %214 = sbr.rel (%p212) target = $region36
        $region35: #{encoder_forward.1} parent=31 // pred_region
          %p215 = scmp.lt.s32.totalorder %s19, 1
          %s216 = scalar_select %p215, %s19, 1
          %s217 = smul.addr %s216, 2
          %s218 = smul.addr %s217, 2
          %s219 = scalar_lea.vmem %s0, %s218
        $region36: #{encoder_forward.1} parent=31 // pred_fallthru
          _
      $region32: #{encoder_forward.1} parent=5 // pred_fallthru
        _
      %p220 = scmp.le.s32.totalorder 1, %s19
      %p221 = scmp.lt.s32.totalorder %s19, 3
      %p222 = pnand %p220, %p221
      %p223 = pneg %p222
      // Predicated region
      $region37: #{encoder_forward.1} parent=5 // pred_check
        _
      $region38: #{encoder_forward.1} parent=5 // pred_check_branch
        %225 = sbr.rel (%p222) target = $region40
      $region39: #{encoder_forward.1} parent=5 // pred_region
        %s226 = ssub.s32 %s19, 1
        %p227 = scmp.lt.s32.totalorder %s24, 1
        %s228 = scalar_select %p227, %s24, 1
        %s229 = smul.addr %s228, 2
        %s230 = smul.addr %s229, 2
        %s231 = scalar_lea.vmem %s0, %s230
        %p232 = pneg %p45
        %p233 = pneg %p42
        %p234 = pneg %p66
        %p235 = pneg %p63
        %p236 = pneg %p87
        %p237 = pneg %p84
        %p238 = pneg %p108
        %p239 = pneg %p105
        %p240 = pneg %p129
        %p241 = pneg %p126
        %p242 = pneg %p155
        %p243 = pneg %p152
        %s244 = sand.u32 %s142, 1
        %s245 = scalar_lea.sflag [#allocation3], %s244
        %s246 = sand.u32 %s142, 1
        %s247 = scalar_lea.vmem [#allocation2], %s246
        %p248 = pneg %p181
        %p249 = pneg %p178
        %s250 = sand.u32 %s168, 1
        %s251 = scalar_lea.sflag [#allocation5], %s250
        %s252 = sand.u32 %s168, 1
        %s253 = scalar_lea.vmem [#allocation4], %s252
        %p254 = scmp.lt.s32.totalorder %s24, 1
        %s255 = scalar_select %p254, %s24, 1
        %s256 = smul.addr %s255, 2
        %s257 = smul.addr %s256, 2
        %s258 = scalar_lea.vmem %s0, %s257
        %v259 = vld [vmem:[%s258] sm:$0xf]
        %v260 = vunpack.c.l.bf16 %v259
        %v262 = vcombine.high %v260, %v260
        %vm264 = vcmask 1043456
        %v265 = vsel %vm264, %v260, 0.0
        %v266 = vrot.slane %v265, 4
        %v267 = vadd.f32 %v265, %v266
        %v268 = vrot.slane %v267, 2
        %v269 = vadd.f32 %v267, %v268
        %v270 = vrot.slane %v269, 1
        %v271 = vadd.f32 %v269, %v270
        %vm272 = vcmask 519168
        %v273 = vsel %vm272, %v262, 0.0
        %v274 = vrot.slane %v273, 4
        %v275 = vadd.f32 %v273, %v274
        %v276 = vrot.slane %v275, 2
        %v277 = vadd.f32 %v275, %v276
        %v278 = vrot.slane %v277, 1
        %v279 = vadd.f32 %v277, %v278
        %v280 = vrcp.pop 4.0
        %v281 = vmul.f32 %v271, %v280
        %v282 = vmul.f32 %v279, %v280
        %v283 = vld [vmem:[%s1] sm:$0xff]
        %v284 = vld [vmem:[%s1 + $0x8] sm:$0xff]
        %v285 = vld [vmem:[%s1 + $0x10] sm:$0xff]
        %v286 = vld [vmem:[%s1 + $0x18] sm:$0xff]
        %v287 = vld [vmem:[%s1 + $0x20] sm:$0xff]
        %v288 = vld [vmem:[%s1 + $0x28] sm:$0xff]
        %v289 = vld [vmem:[%s1 + $0x30] sm:$0xff]
        %v290 = vld [vmem:[%s1 + $0x38] sm:$0xff]
        %v291 = vld [vmem:[%s1 + $0x40] sm:$0xff]
        %v292 = vld [vmem:[%s1 + $0x48] sm:$0xff]
        %v293 = vld [vmem:[%s1 + $0x50] sm:$0xff]
        %v294 = vld [vmem:[%s1 + $0x58] sm:$0xff]
        %v295 = vld [vmem:[%s1 + $0x60] sm:$0xff]
        %v296 = vld [vmem:[%s1 + $0x68] sm:$0xff]
        %v297 = vld [vmem:[%s1 + $0x70] sm:$0xff]
        %v298 = vld [vmem:[%s1 + $0x78] sm:$0xff]
        %v299 = vld [vmem:[%s1 + $0x80] sm:$0xff]
        %v300 = vld [vmem:[%s1 + $0x88] sm:$0xff]
        %v301 = vld [vmem:[%s1 + $0x90] sm:$0xff]
        %v302 = vld [vmem:[%s1 + $0x98] sm:$0xff]
        %v303 = vld [vmem:[%s1 + $0xa0] sm:$0xff]
        %v304 = vld [vmem:[%s1 + $0xa8] sm:$0xff]
        %v305 = vld [vmem:[%s1 + $0xb0] sm:$0xff]
        %v306 = vld [vmem:[%s1 + $0xb8] sm:$0xff]
        %v307 = vld [vmem:[%s2] sm:$0x1]
        %vm308 = vcmask 523264
        %v310 = vsel %vm308, %v282, 0
        %312 = vmatprep.subr.mxu0 0.0
        %313 = vmatpush1.msra.mxu0 %v298
        %314 = vmatprep.subr.mxu0 0.0
        %315 = vmatpush1.msra.mxu0 %v297
        %316 = vmatprep.subr.mxu0 0.0
        %317 = vmatpush1.msra.mxu0 %v296
        %318 = vmatprep.subr.mxu0 0.0
        %319 = vmatpush1.msra.mxu0 %v295
        %320 = vmatprep.subr.mxu0 0.0
        %321 = vmatpush1.msra.mxu0 %v294
        %322 = vmatprep.subr.mxu0 0.0
        %323 = vmatpush1.msra.mxu0 %v293
        %324 = vmatprep.subr.mxu0 0.0
        %325 = vmatpush1.msra.mxu0 %v292
        %326 = vmatprep.subr.mxu0 0.0
        %327 = vmatpush1.msra.mxu0 %v291
        %328 = vmatprep.subr.mxu0 0.0
        %329 = vmatpush1.msra.mxu0 %v290
        %330 = vmatprep.subr.mxu0 0.0
        %331 = vmatpush1.msra.mxu0 %v289
        %332 = vmatprep.subr.mxu0 0.0
        %333 = vmatpush1.msra.mxu0 %v288
        %334 = vmatprep.subr.mxu0 0.0
        %335 = vmatpush1.msra.mxu0 %v287
        %336 = vmatprep.subr.mxu0 0.0
        %337 = vmatpush1.msra.mxu0 %v286
        %338 = vmatprep.subr.mxu0 0.0
        %339 = vmatpush1.msra.mxu0 %v285
        %340 = vmatprep.subr.mxu0 0.0
        %341 = vmatpush1.msra.mxu0 %v284
        %342 = vmatprep.subr.mxu0 0.0
        %343 = vmatpush1.msra.mxu0 %v283
        %344 = vmatprep.subr.mxu0 0.0
        %345 = vmatpush2.msra.mxu0 0.0
        %346 = vmatprep.subr.mxu0 0.0
        %347 = vmatpush2.msra.mxu0 0.0
        %348 = vmatprep.subr.mxu0 0.0
        %349 = vmatpush2.msra.mxu0 0.0
        %350 = vmatprep.subr.mxu0 0.0
        %351 = vmatpush2.msra.mxu0 0.0
        %352 = vmatprep.subr.mxu0 0.0
        %353 = vmatpush2.msra.mxu0 0.0
        %354 = vmatprep.subr.mxu0 0.0
        %355 = vmatpush2.msra.mxu0 0.0
        %356 = vmatprep.subr.mxu0 0.0
        %357 = vmatpush2.msra.mxu0 0.0
        %358 = vmatprep.subr.mxu0 0.0
        %359 = vmatpush2.msra.mxu0 0.0
        %360 = vmatprep.subr.mxu0 0.0
        %361 = vmatpush2.msra.mxu0 %v306
        %362 = vmatprep.subr.mxu0 0.0
        %363 = vmatpush2.msra.mxu0 %v305
        %364 = vmatprep.subr.mxu0 0.0
        %365 = vmatpush2.msra.mxu0 %v304
        %366 = vmatprep.subr.mxu0 0.0
        %367 = vmatpush2.msra.mxu0 %v303
        %368 = vmatprep.subr.mxu0 0.0
        %369 = vmatpush2.msra.mxu0 %v302
        %370 = vmatprep.subr.mxu0 0.0
        %371 = vmatpush2.msra.mxu0 %v301
        %372 = vmatprep.subr.mxu0 0.0
        %373 = vmatpush2.msra.mxu0 %v300
        %374 = vmatprep.subr.mxu0 0.0
        %375 = vmatpush2.msra.mxu0 %v299
        %376 = vmatprep.mubr.f32.mxu0 %v310
        %377 = vmatmul.mubr.f32.gmra.mxu0 %v281
        %v378 = vpop.f32.mrf.mxu0
        %v379 = vadd.f32 %v307, %v378
        %v380 = vpop.f32.mrf.mxu0
        %381 = vdwg.mxu0
        %v382 = vld [vmem:[%s3] sm:$0xff]
        %v383 = vld [vmem:[%s3 + $0x8] sm:$0xff]
        %v384 = vld [vmem:[%s3 + $0x10] sm:$0xff]
        %v385 = vld [vmem:[%s3 + $0x18] sm:$0xff]
        %v386 = vld [vmem:[%s4] sm:$0x1]
        %vm387 = vcmask 261120
        %v389 = vsel %vm387, %v379, 0
        %391 = vmatprep.subr.mxu0 0.0
        %392 = vmatpush1.msra.mxu0 0.0
        %393 = vmatprep.subr.mxu0 0.0
        %394 = vmatpush1.msra.mxu0 0.0
        %395 = vmatprep.subr.mxu0 0.0
        %396 = vmatpush1.msra.mxu0 0.0
        %397 = vmatprep.subr.mxu0 0.0
        %398 = vmatpush1.msra.mxu0 0.0
        %399 = vmatprep.subr.mxu0 0.0
        %400 = vmatpush1.msra.mxu0 0.0
        %401 = vmatprep.subr.mxu0 0.0
        %402 = vmatpush1.msra.mxu0 0.0
        %403 = vmatprep.subr.mxu0 0.0
        %404 = vmatpush1.msra.mxu0 0.0
        %405 = vmatprep.subr.mxu0 0.0
        %406 = vmatpush1.msra.mxu0 0.0
        %407 = vmatprep.subr.mxu0 0.0
        %408 = vmatpush1.msra.mxu0 0.0
        %409 = vmatprep.subr.mxu0 0.0
        %410 = vmatpush1.msra.mxu0 0.0
        %411 = vmatprep.subr.mxu0 0.0
        %412 = vmatpush1.msra.mxu0 0.0
        %413 = vmatprep.subr.mxu0 0.0
        %414 = vmatpush1.msra.mxu0 0.0
        %415 = vmatprep.subr.mxu0 0.0
        %416 = vmatpush1.msra.mxu0 %v385
        %417 = vmatprep.subr.mxu0 0.0
        %418 = vmatpush1.msra.mxu0 %v384
        %419 = vmatprep.subr.mxu0 0.0
        %420 = vmatpush1.msra.mxu0 %v383
        %421 = vmatprep.subr.mxu0 0.0
        %422 = vmatpush1.msra.mxu0 %v382
        %423 = vmatprep.subr.mxu0 0.0
        %424 = vmatpush2.msra.mxu0 0.0
        %425 = vmatprep.subr.mxu0 0.0
        %426 = vmatpush2.msra.mxu0 0.0
        %427 = vmatprep.subr.mxu0 0.0
        %428 = vmatpush2.msra.mxu0 0.0
        %429 = vmatprep.subr.mxu0 0.0
        %430 = vmatpush2.msra.mxu0 0.0
        %431 = vmatprep.subr.mxu0 0.0
        %432 = vmatpush2.msra.mxu0 0.0
        %433 = vmatprep.subr.mxu0 0.0
        %434 = vmatpush2.msra.mxu0 0.0
        %435 = vmatprep.subr.mxu0 0.0
        %436 = vmatpush2.msra.mxu0 0.0
        %437 = vmatprep.subr.mxu0 0.0
        %438 = vmatpush2.msra.mxu0 0.0
        %439 = vmatprep.subr.mxu0 0.0
        %440 = vmatpush2.msra.mxu0 0.0
        %441 = vmatprep.subr.mxu0 0.0
        %442 = vmatpush2.msra.mxu0 0.0
        %443 = vmatprep.subr.mxu0 0.0
        %444 = vmatpush2.msra.mxu0 0.0
        %445 = vmatprep.subr.mxu0 0.0
        %446 = vmatpush2.msra.mxu0 0.0
        %447 = vmatprep.subr.mxu0 0.0
        %448 = vmatpush2.msra.mxu0 0.0
        %449 = vmatprep.subr.mxu0 0.0
        %450 = vmatpush2.msra.mxu0 0.0
        %451 = vmatprep.subr.mxu0 0.0
        %452 = vmatpush2.msra.mxu0 0.0
        %453 = vmatprep.subr.mxu0 0.0
        %454 = vmatpush2.msra.mxu0 0.0
        %455 = vmatprep.mubr.f32.mxu0 0.0
        %456 = vmatmul.mubr.f32.gmra.mxu0 %v389
        %v457 = vpop.f32.mrf.mxu0
        %v458 = vadd.f32 %v386, %v457
        %v459 = vpop.f32.mrf.mxu0
        %460 = vdwg.mxu0
        %vm461 = vcmask 253952
        %462 = vst.msk [vmem:[%s253] sm:$0x1] %vm461, %v379
        %vm463 = vcmask 122880
        %464 = vst.msk [vmem:[%s247] sm:$0x1] %vm463, %v458
        %s465 = sand.u32 %s142, 1
        %s466 = scalar_lea.sflag [#allocation3], %s465
        %s467 = sand.u32 %s142, 1
        %s468 = scalar_lea.vmem [#allocation2], %s467
        %s469 = sand.u32 %s168, 1
        %s470 = scalar_lea.sflag [#allocation5], %s469
        %s471 = sand.u32 %s168, 1
        %s472 = scalar_lea.vmem [#allocation4], %s471
        // Predicated region
        $region41: #{encoder_forward.1} parent=39 // pred_check
          %p473 = pneg %p152
        $region42: #{encoder_forward.1} parent=39 // pred_check_branch
          %475 = sbr.rel (%p473) target = $region44
        $region43: #{encoder_forward.1} parent=39 // pred_region
          %s477 = ssub.s32 16, 16
          %478 = vsyncadd %s466, %s477
          %s479 = smul.addr %s24, 16
          %s480 = scalar_lea.hbm %s5, %s479
          %s482 = sshll.u32 %s468, 4
          %s483 = int_to_ptr.vmem [resolvable:$true] %s482
          %485 = dma.vmem_to_hbm [thread:$0]  %s483, 16, %s480, %s466
        $region44: #{encoder_forward.1} parent=39 // pred_fallthru
          _
        // Predicated region
        $region45: #{encoder_forward.1} parent=39 // pred_check
          %p486 = pneg %p178
        $region46: #{encoder_forward.1} parent=39 // pred_check_branch
          %488 = sbr.rel (%p486) target = $region48
        $region47: #{encoder_forward.1} parent=39 // pred_region
          %s490 = ssub.s32 16, 16
          %491 = vsyncadd %s470, %s490
          %s492 = smul.addr %s24, 16
          %s493 = scalar_lea.hbm %s6, %s492
          %s495 = sshll.u32 %s472, 4
          %s496 = int_to_ptr.vmem [resolvable:$true] %s495
          %498 = dma.vmem_to_hbm [thread:$0]  %s496, 16, %s493, %s470
        $region48: #{encoder_forward.1} parent=39 // pred_fallthru
          _
      $region40: #{encoder_forward.1} parent=5 // pred_fallthru
        _
      %p499 = scmp.le.s32.totalorder 2, %s19
      // Predicated region
      $region49: #{encoder_forward.1} parent=5 // pred_check
        %p500 = pneg %p499
      $region50: #{encoder_forward.1} parent=5 // pred_check_branch
        %502 = sbr.rel (%p500) target = $region52
      $region51: #{encoder_forward.1} parent=5 // pred_region
        %s503 = ssub.s32 %s19, 2
        // Predicated region
        $region53: #{encoder_forward.1} parent=51 // pred_check
          %p504 = pneg %p158
        $region54: #{encoder_forward.1} parent=51 // pred_check_branch
          %506 = sbr.rel (%p504) target = $region56
        $region55: #{encoder_forward.1} parent=51 // pred_region
          %s507 = sand.u32 %s143, 1
          %s508 = scalar_lea.sflag [#allocation3], %s507
          %s509 = sand.u32 %s143, 1
          %s510 = scalar_lea.vmem [#allocation2], %s509
          %511 = dma.done %s508, 16
        $region56: #{encoder_forward.1} parent=51 // pred_fallthru
          _
        // Predicated region
        $region57: #{encoder_forward.1} parent=51 // pred_check
          %p512 = pneg %p184
        $region58: #{encoder_forward.1} parent=51 // pred_check_branch
          %514 = sbr.rel (%p512) target = $region60
        $region59: #{encoder_forward.1} parent=51 // pred_region
          %s515 = sand.u32 %s169, 1
          %s516 = scalar_lea.sflag [#allocation5], %s515
          %s517 = sand.u32 %s169, 1
          %s518 = scalar_lea.vmem [#allocation4], %s517
          %519 = dma.done %s516, 16
        $region60: #{encoder_forward.1} parent=51 // pred_fallthru
          _
      $region52: #{encoder_forward.1} parent=5 // pred_fallthru
        _
    $region6: #{encoder_forward.1} parent=1 // loop_footer
      %s23 = sadd.s32 1, %s19
    $region7: #{encoder_forward.1} parent=1 // loop_footer_branch
      %18 = sbr.rel target = $region3
    $region8: #{encoder_forward.1} parent=1 // loop_exit
      _
    %520 = vsyncpa [#allocation3], 1
    %s521 = scalar_lea.sflag [#allocation3], 1
    %522 = vsyncpa %s521, 1
    %523 = vsyncpa [#allocation5], 1
    %s524 = scalar_lea.sflag [#allocation5], 1
    %525 = vsyncpa %s524, 1

</llo_original>
